<compile_context>
chip_gen: v7x
topology: tpu7x:2x2x1
jax: 0.10.0
libtpu: 0.0.40
codegen_flags: <defaults>
</compile_context>

<pallas_src>
import functools

import jax
import jax.numpy as jnp
from jax.experimental import pallas as pl
from jax.experimental.pallas import tpu as pltpu


_MAX_UNROLL_CLASSES = 32  # use the direct NCHW kernel (unrolled over C) up to this many classes


# ---------------------------------------------------------------------------
# VMEM budgeting (generation-aware: v5e/v6e = 128 MiB physical, v7x = 64 MiB)
# ---------------------------------------------------------------------------
def _vmem_capacity_bytes():
    try:
        return int(pltpu.get_tpu_info().vmem_capacity_bytes)
    except Exception:
        return 64 * 1024 * 1024  # conservative default (v7x-sized)


def _vmem_limit_bytes():
    cap = _vmem_capacity_bytes()
    return int(min(cap, 128 * 1024 * 1024) * 3 // 4)  # 96 MiB on v5e/v6e, 48 MiB on v7x


def _pick_spatial_tile(n_batch, n_classes, s128, itemsize):
    """Pick TS8 (number of 128-lane pixel rows per block) for the NCHW path, or None."""
    limit = _vmem_limit_bytes()
    # per unit of ts8: double-buffered x block + double-buffered y block + ~6 f32 temporaries
    bytes_per_ts8 = 128 * (2 * n_classes * itemsize + 2 * 4 + 6 * 4)
    max_ts8 = limit // bytes_per_ts8
    if max_ts8 < 1:
        return None
    # Prefer >= 4 total grid steps: keeps both v7x TensorCores busy and the DMA pipeline primed.
    if n_batch * s128 >= 4:
        max_ts8 = min(max_ts8, max(8, (n_batch * s128) // 4))
    if s128 <= max_ts8:
        return s128  # whole spatial extent in one block (block dim == full array dim is legal)
    best = None
    d = 8
    stop = min(max_ts8, s128)
    while d <= stop:  # largest multiple-of-8 divisor of s128 that fits the budget
        if s128 % d == 0:
            best = d
        d += 8
    return best


def _pick_row_tile(n_rows, n_classes, itemsize):
    """Pick the row tile for the generic (R, C) path."""
    limit = _vmem_limit_bytes()
    # double-buffered x block (native dtype) + y block + ~4 block-sized f32/i32 temporaries
    bytes_per_row = n_classes * (2 * itemsize + 20) + 16
    row_tile = 8
    for cand in (32768, 16384, 8192, 4096, 2048, 1024, 512, 256, 128, 64, 32, 16, 8):
        if cand * bytes_per_row <= limit:
            row_tile = cand
            break
    # Megacore (v7x has 2 TensorCores): prefer >= 4 grid steps when there is enough work.
    while row_tile > 1024 and pl.cdiv(n_rows, row_tile) < 4:
        row_tile //= 2
    # Don't make the block (much) larger than the array; only the last block stays ragged.
    row_tile = min(row_tile, max(128, (n_rows // 128) * 128))
    return row_tile
    # TODO(synk): for vocab-scale C (>= ~1M per-row bytes) add an 'arbitrary' class-tiling grid
    # axis with a VMEM best/gt accumulator so row tiles stay large within v7x's 64 MiB VMEM.


# ---------------------------------------------------------------------------
# Kernels
# ---------------------------------------------------------------------------
def _svm_nchw_loss_kernel(x_ref, y_ref, out_ref, *, alpha, n_classes):
    """NCHW tile, per-pixel loss output (reduction='none').

    x_ref  : (C, TS8, 128) scores, native dtype (upcast after load)
    y_ref  : (TS8, 128)    int32 labels
    out_ref: (TS8, 128)    float32 per-pixel loss (lane-dense)
    """
    y = y_ref[...]
    a = jnp.float32(alpha)
    zero = jnp.float32(0.0)

    x0 = x_ref[0].astype(jnp.float32)
    hit = y == 0
    best = x0 + jnp.where(hit, zero, a)        # augmented score for class 0
    gt = jnp.where(hit, x0, zero)              # ground-truth score accumulator
    for c in range(1, n_classes):              # unrolled: (C-1) VPU maxima + selects
        xc = x_ref[c].astype(jnp.float32)
        hit = y == c
        best = jnp.maximum(best, xc + jnp.where(hit, zero, a))
        gt = gt + jnp.where(hit, xc, zero)
    # NOTE: out-of-range labels (y < 0 or y >= C) silently give gt == 0 (documented behavior).
    out_ref[...] = best - gt


def _svm_nchw_sum_kernel(*refs, alpha, n_classes, has_weight):
    """NCHW tile, fused (optionally class-weighted) partial sum (reduction='mean'/'sum').

    refs (has_weight=False): x_ref (C, TS8, 128), y_ref (TS8, 128), out_ref (8, 128)
    refs (has_weight=True) : x_ref, y_ref, w_ref (C,) f32 in SMEM, out_ref (8, 128)
    out_ref[0, 0] holds the partial sum for this grid step; the rest of the tile is zero.
    """
    if has_weight:
        x_ref, y_ref, w_ref, out_ref = refs
    else:
        x_ref, y_ref, out_ref = refs
        w_ref = None

    y = y_ref[...]
    a = jnp.float32(alpha)
    zero = jnp.float32(0.0)

    x0 = x_ref[0].astype(jnp.float32)
    hit = y == 0
    best = x0 + jnp.where(hit, zero, a)
    gt = jnp.where(hit, x0, zero)
    if has_weight:
        wsel = jnp.where(hit, w_ref[0], zero)  # per-pixel weight[y], built up over the unroll
    for c in range(1, n_classes):
        xc = x_ref[c].astype(jnp.float32)
        hit = y == c
        best = jnp.maximum(best, xc + jnp.where(hit, zero, a))
        gt = gt + jnp.where(hit, xc, zero)
        if has_weight:
            wsel = wsel + jnp.where(hit, w_ref[c], zero)

    loss = best - gt
    if has_weight:
        loss = wsel * loss
    partial = jnp.sum(loss)

    r = jax.lax.broadcasted_iota(jnp.int32, (8, 128), 0)
    l = jax.lax.broadcasted_iota(jnp.int32, (8, 128), 1)
    out_ref[...] = jnp.where((r == 0) & (l == 0), partial, zero)


def _svm_rows_loss_kernel(x_ref, y_ref, out_ref, *, alpha):
    """Generic row-tiled tile, per-row loss output (reduction='none').

    x_ref  : (TR, C) scores, native dtype
    y_ref  : (TR, 1) int32 labels
    out_ref: (TR, 1) float32 per-row loss
    """
    x = x_ref[...].astype(jnp.float32)
    y = y_ref[...]
    zero = jnp.float32(0.0)
    cls = jax.lax.broadcasted_iota(jnp.int32, x.shape, 1)
    is_gt = cls == y
    aug = x + jnp.where(is_gt, zero, jnp.float32(alpha))
    max_aug = jnp.max(aug, axis=1, keepdims=True)
    gt = jnp.sum(jnp.where(is_gt, x, zero), axis=1, keepdims=True)
    # TODO(synk): a lane-dense (TR//128, 128) store needs an in-kernel sublane->lane relayout;
    # the common 'mean'/'sum' path (below) avoids this (TR, 1) store entirely instead.
    out_ref[...] = max_aug - gt


def _svm_rows_sum_kernel(*refs, alpha, n_rows, row_tile, has_weight):
    """Generic row-tiled tile, fused (optionally weighted) partial sum with ragged-row masking.

    refs (has_weight=False): x_ref (TR, C), y_ref (TR, 1), out_ref (8, 128)
    refs (has_weight=True) : x_ref, y_ref, w_ref (1, C) f32, out_ref (8, 128)
    """
    if has_weight:
        x_ref, y_ref, w_ref, out_ref = refs
    else:
        x_ref, y_ref, out_ref = refs
        w_ref = None

    x = x_ref[...].astype(jnp.float32)
    y = y_ref[...]
    zero = jnp.float32(0.0)
    cls = jax.lax.broadcasted_iota(jnp.int32, x.shape, 1)
    is_gt = cls == y
    aug = x + jnp.where(is_gt, zero, jnp.float32(alpha))
    loss = (jnp.max(aug, axis=1, keepdims=True)
            - jnp.sum(jnp.where(is_gt, x, zero), axis=1, keepdims=True))     # (TR, 1)
    if has_weight:
        loss = loss * jnp.sum(jnp.where(is_gt, w_ref[...], zero), axis=1, keepdims=True)

    # Mask the out-of-bounds rows of the ragged last block (their data is unspecified).
    row = pl.program_id(0) * row_tile + jax.lax.broadcasted_iota(jnp.int32, loss.shape, 0)
    loss = jnp.where(row < n_rows, loss, zero)
    partial = jnp.sum(loss)

    r = jax.lax.broadcasted_iota(jnp.int32, (8, 128), 0)
    l = jax.lax.broadcasted_iota(jnp.int32, (8, 128), 1)
    out_ref[...] = jnp.where((r == 0) & (l == 0), partial, zero)


# ---------------------------------------------------------------------------
# Drivers
# ---------------------------------------------------------------------------
def _nchw_losses(x_s, y_s, ts8, alpha):
    """x_s: (N, C, S128, 128) scores, y_s: (N, S128, 128) int32 -> (N, S128, 128) f32 losses."""
    N, C, S128, _ = x_s.shape
    nS = S128 // ts8
    return pl.pallas_call(
        functools.partial(_svm_nchw_loss_kernel, alpha=float(alpha), n_classes=C),
        out_shape=jax.ShapeDtypeStruct((N, S128, 128), jnp.float32),
        grid_spec=pltpu.PrefetchScalarGridSpec(
            num_scalar_prefetch=0,
            grid=(N, nS),
            in_specs=[
                pl.BlockSpec((None, C, ts8, 128), lambda n, s: (n, 0, s, 0)),
                pl.BlockSpec((None, ts8, 128), lambda n, s: (n, s, 0)),
            ],
            out_specs=pl.BlockSpec((None, ts8, 128), lambda n, s: (n, s, 0)),
        ),
        compiler_params=pltpu.CompilerParams(
            dimension_semantics=("parallel", "parallel"),
            vmem_limit_bytes=_vmem_limit_bytes(),
        ),
    )(x_s, y_s)


def _nchw_weighted_sum(x_s, y_s, ts8, alpha, weight):
    """Fused weighted sum over all pixels. Returns a float32 scalar."""
    N, C, S128, _ = x_s.shape
    nS = S128 // ts8
    has_weight = weight is not None
    kernel = functools.partial(_svm_nchw_sum_kernel, alpha=float(alpha), n_classes=C,
                               has_weight=has_weight)
    in_specs = [
        pl.BlockSpec((None, C, ts8, 128), lambda n, s: (n, 0, s, 0)),
        pl.BlockSpec((None, ts8, 128), lambda n, s: (n, s, 0)),
    ]
    args = [x_s, y_s]
    if has_weight:
        in_specs.append(pl.BlockSpec(memory_space=pltpu.MemorySpace.SMEM))  # (C,) f32 scalars
        args.append(weight.astype(jnp.float32))
    partials = pl.pallas_call(
        kernel,
        out_shape=jax.ShapeDtypeStruct((N, nS, 8, 128), jnp.float32),
        grid_spec=pltpu.PrefetchScalarGridSpec(
            num_scalar_prefetch=0,
            grid=(N, nS),
            in_specs=in_specs,
            out_specs=pl.BlockSpec((None, None, 8, 128), lambda n, s: (n, s, 0, 0)),
        ),
        compiler_params=pltpu.CompilerParams(
            dimension_semantics=("parallel", "parallel"),
            vmem_limit_bytes=_vmem_limit_bytes(),
        ),
    )(*args)
    return jnp.sum(partials)


def _rows_losses(x2d, y1d, alpha):
    """x2d: (R, C) scores (native dtype), y1d: (R,) int32 -> (R,) float32 losses."""
    R, C = x2d.shape
    row_tile = _pick_row_tile(R, C, x2d.dtype.itemsize)
    nsteps = pl.cdiv(R, row_tile)
    y2d = y1d.reshape(R, 1)
    out = pl.pallas_call(
        functools.partial(_svm_rows_loss_kernel, alpha=float(alpha)),
        out_shape=jax.ShapeDtypeStruct((R, 1), jnp.float32),
        grid_spec=pltpu.PrefetchScalarGridSpec(
            num_scalar_prefetch=0,
            grid=(nsteps,),
            in_specs=[
                pl.BlockSpec((row_tile, C), lambda i: (i, 0)),
                pl.BlockSpec((row_tile, 1), lambda i: (i, 0)),
            ],
            out_specs=pl.BlockSpec((row_tile, 1), lambda i: (i, 0)),
        ),
        compiler_params=pltpu.CompilerParams(
            dimension_semantics=("parallel",),
            vmem_limit_bytes=_vmem_limit_bytes(),
        ),
    )(x2d, y2d)
    return out.reshape(R)


def _rows_weighted_sum(x2d, y1d, alpha, weight):
    """Fused weighted sum over all rows (ragged last block masked in-kernel). f32 scalar."""
    R, C = x2d.shape
    row_tile = _pick_row_tile(R, C, x2d.dtype.itemsize)
    nsteps = pl.cdiv(R, row_tile)
    y2d = y1d.reshape(R, 1)
    has_weight = weight is not None
    kernel = functools.partial(_svm_rows_sum_kernel, alpha=float(alpha), n_rows=R,
                               row_tile=row_tile, has_weight=has_weight)
    in_specs = [
        pl.BlockSpec((row_tile, C), lambda i: (i, 0)),
        pl.BlockSpec((row_tile, 1), lambda i: (i, 0)),
    ]
    args = [x2d, y2d]
    if has_weight:
        in_specs.append(pl.BlockSpec((1, C), lambda i: (0, 0)))  # same weight block every step
        args.append(weight.astype(jnp.float32).reshape(1, C))
    partials = pl.pallas_call(
        kernel,
        out_shape=jax.ShapeDtypeStruct((nsteps, 8, 128), jnp.float32),
        grid_spec=pltpu.PrefetchScalarGridSpec(
            num_scalar_prefetch=0,
            grid=(nsteps,),
            in_specs=in_specs,
            out_specs=pl.BlockSpec((None, 8, 128), lambda i: (i, 0, 0)),
        ),
        compiler_params=pltpu.CompilerParams(
            dimension_semantics=("parallel",),
            vmem_limit_bytes=_vmem_limit_bytes(),
        ),
    )(*args)
    return jnp.sum(partials)


# ---------------------------------------------------------------------------
# Module forward pass
# ---------------------------------------------------------------------------
def max_top1_svm(x, y, n_classes, alpha=None, weight=None, reduction="mean"):
    """Forward pass of MaxTop1SVM.

    x: (N, C) or (N, C, *spatial) scores (NCHW for 4-D), C == n_classes.
    y: integer labels, flattened exactly like the PyTorch `_handle_multi_dim`.
    """
    assert reduction in ("mean", "sum", "none")
    alpha = 1.0 if alpha is None else float(alpha)
    if weight is not None:
        weight = jnp.asarray(weight)
        assert weight.ndim == 1 and weight.shape[0] == n_classes

    # --- fast path: 4-D NCHW scores with small C, tiled directly (no HBM transpose of x) ---
    if (x.ndim == 4 and x.shape[1] == n_classes and n_classes <= _MAX_UNROLL_CLASSES
            and (x.shape[2] * x.shape[3]) % 128 == 0):
        N, C, H, W = x.shape
        S = H * W
        S128 = S // 128
        ts8 = _pick_spatial_tile(N, C, S128, x.dtype.itemsize)
        if ts8 is not None:
            # Reproduce the original pairing: x[n, :, h, w] <-> y.reshape(-1)[n*W*H + w*H + h].
            # Only y (C-times fewer elements than x) is reordered in HBM; x stays put.
            y_paired = jnp.swapaxes(y.reshape(N, W, H), 1, 2).astype(jnp.int32)  # (N, H, W)
            x_s = x.reshape(N, C, S128, 128)                   # free trailing-dim reshape
            y_s = y_paired.reshape(N, S128, 128)
            if reduction == "none":
                losses = _nchw_losses(x_s, y_s, ts8, alpha).reshape(N, H, W)
                if weight is not None:
                    losses = weight[y_paired].astype(jnp.float32) * losses
                # 'none': module output shape is x.transpose(1, -1).shape[:-1] == (N, W, H).
                return jnp.swapaxes(losses, 1, 2)
            total = _nchw_weighted_sum(x_s, y_s, ts8, alpha, weight)
            if reduction == "mean":
                # NOTE: weighted 'mean' divides by the element count (matches the module),
                # not by sum(weight[y]).
                return total / jnp.float32(N * S)
            return total

    # --- generic path: mirror PyTorch's transpose(1, -1) + reshape(-1, C) exactly ---
    x_size = None
    if x.ndim > 2:
        # TODO(synk): for 4-D inputs with n_classes > _MAX_UNROLL_CLASSES (or ragged spatial),
        # tile the class axis in-kernel instead of paying this full HBM transpose of x.
        x = jnp.swapaxes(x, 1, -1)
        x_size = x.shape[:-1]
        x = x.reshape(-1, x.shape[-1])
        y = y.reshape(-1)
    assert x.shape[-1] == n_classes
    R = x.shape[0]
    y = y.reshape(-1).astype(jnp.int32)

    if reduction == "none":
        out = _rows_losses(x, y, alpha)                          # (R,) float32
        if weight is not None:
            out = weight[y].astype(jnp.float32) * out
        if x_size is not None:
            out = out.reshape(*x_size)
        return out

    total = _rows_weighted_sum(x, y, alpha, weight)
    if reduction == "mean":
        return total / jnp.float32(R)
    return total


# ---------------------------------------------------------------------------
# Pure-JAX reference (faithful to the PyTorch module, used only for verification)
# ---------------------------------------------------------------------------
def _reference(x, y, n_classes, alpha=1.0, weight=None, reduction="mean"):
    x = x.astype(jnp.float32)
    x_size = None
    if x.ndim > 2:
        x = jnp.swapaxes(x, 1, -1)
        x_size = x.shape[:-1]
        x = x.reshape(-1, x.shape[-1])
        y = y.reshape(-1)
    y = y.astype(jnp.int32)
    labels = jnp.arange(n_classes)
    delta = alpha * (labels[None, :] != y[:, None]).astype(jnp.float32)
    out = jnp.max(x + delta, axis=1) - jnp.take_along_axis(x, y[:, None], axis=1)[:, 0]
    if weight is not None:
        out = jnp.asarray(weight)[y].astype(jnp.float32) * out
    if x_size is not None:
        out = out.reshape(*x_size)
    if reduction == "mean":
        return out.mean()
    if reduction == "sum":
        return out.sum()
    return out


if __name__ == "__main__":
    n_classes = 4
    N, C, H, W = 2, n_classes, 16, 16  # x: NCHW scores, y: integer labels
    key = jax.random.PRNGKey(0)
    kx, ky, kw, k2x, k2y = jax.random.split(key, 5)

    x = jax.random.normal(kx, (N, C, H, W), dtype=jnp.float32)
    y = jax.random.randint(ky, (N, H, W), 0, n_classes, dtype=jnp.int32)
    wgt4 = jax.random.uniform(kw, (n_classes,), dtype=jnp.float32) + 0.5

    # 1) 4-D NCHW float32, mean  -> lane-dense flattened-spatial kernel with fused in-kernel sum
    loss = jax.block_until_ready(max_top1_svm(x, y, n_classes, alpha=None, reduction="mean"))
    ref = _reference(x, y, n_classes, alpha=1.0, reduction="mean")
    assert jnp.allclose(loss, ref, atol=1e-5, rtol=1e-5), (loss, ref)

    # 2) 4-D NCHW bfloat16, weighted sum -> native-dtype loads + SMEM class weights, fused sum
    xb = x.astype(jnp.bfloat16)
    loss_b = jax.block_until_ready(
        max_top1_svm(xb, y, n_classes, alpha=1.5, weight=wgt4, reduction="sum"))
    ref_b = _reference(xb, y, n_classes, alpha=1.5, weight=wgt4, reduction="sum")
    assert jnp.allclose(loss_b, ref_b, atol=1e-3, rtol=1e-4), (loss_b, ref_b)

    # 3) 4-D NCHW float32, weighted 'none' -> per-pixel loss kernel + (N, W, H) output quirk
    out_n = jax.block_until_ready(
        max_top1_svm(x, y, n_classes, alpha=0.7, weight=wgt4, reduction="none"))
    ref_n = _reference(x, y, n_classes, alpha=0.7, weight=wgt4, reduction="none")
    assert out_n.shape == (N, W, H)
    assert jnp.allclose(out_n, ref_n, atol=1e-5, rtol=1e-5)

    # 4) 2-D (R, C), R not tile-aligned, per-class weights, 'none' -> ragged last block path
    R2, C2 = 200, 10
    x2 = jax.random.normal(k2x, (R2, C2), dtype=jnp.float32)
    y2 = jax.random.randint(k2y, (R2,), 0, C2, dtype=jnp.int32)
    wgt = jax.random.uniform(kw, (C2,), dtype=jnp.float32) + 0.5
    out2 = jax.block_until_ready(
        max_top1_svm(x2, y2, C2, alpha=0.5, weight=wgt, reduction="none"))
    ref2 = _reference(x2, y2, C2, alpha=0.5, weight=wgt, reduction="none")
    assert out2.shape == (R2,)
    assert jnp.allclose(out2, ref2, atol=1e-5, rtol=1e-5), (out2, ref2)

    # 5) 2-D weighted 'mean' -> fused rows sum with in-kernel masking of the ragged block
    out3 = jax.block_until_ready(
        max_top1_svm(x2, y2, C2, alpha=0.5, weight=wgt, reduction="mean"))
    ref3 = _reference(x2, y2, C2, alpha=0.5, weight=wgt, reduction="mean")
    assert jnp.allclose(out3, ref3, atol=1e-5, rtol=1e-5), (out3, ref3)

    print("KERNEL_OK")
</pallas_src>

<mosaic_0001>
module attributes {stable_mosaic.version = 11 : i64} {
  func.func @_svm_nchw_sum_kernel(%arg0: i32, %arg1: i32, %arg2: memref<1x4x2x128xf32, #tpu.memory_space<vmem>>, %arg3: memref<1x2x128xi32, #tpu.memory_space<vmem>>, %arg4: memref<1x1x8x128xf32, #tpu.memory_space<vmem>>) attributes {dimension_semantics = [#tpu.dimension_semantics<parallel>, #tpu.dimension_semantics<parallel>], iteration_bounds = array<i64: 2, 1>, scalar_prefetch = 0 : i64, scratch_operands = 0 : i64, tpu.core_type = #tpu.core_type<tc>, window_params = [{transform_indices = @transform_0, window_bounds = array<i64: 1, 4, 2, 128>}, {transform_indices = @transform_1, window_bounds = array<i64: 1, 2, 128>}, {transform_indices = @transform_2, window_bounds = array<i64: 1, 1, 8, 128>}]} {
    %c0 = arith.constant 0 : index
    %c0_0 = arith.constant 0 : index
    %c0_1 = arith.constant 0 : index
    %0 = vector.load %arg3[%c0, %c0_0, %c0_1] : memref<1x2x128xi32, #tpu.memory_space<vmem>>, vector<1x2x128xi32>
    %1 = vector.shape_cast %0 : vector<1x2x128xi32> to vector<2x128xi32>
    %c0_2 = arith.constant 0 : index
    %c0_3 = arith.constant 0 : index
    %c0_4 = arith.constant 0 : index
    %c0_5 = arith.constant 0 : index
    %2 = vector.load %arg2[%c0_2, %c0_3, %c0_4, %c0_5] : memref<1x4x2x128xf32, #tpu.memory_space<vmem>>, vector<1x1x2x128xf32>
    %3 = vector.shape_cast %2 : vector<1x1x2x128xf32> to vector<2x128xf32>
    %c0_i32 = arith.constant 0 : i32
    %4 = vector.broadcast %c0_i32 : i32 to vector<2x128xi32>
    %5 = arith.cmpi eq, %1, %4 : vector<2x128xi32>
    %cst = arith.constant 0.000000e+00 : f32
    %cst_6 = arith.constant 1.000000e+00 : f32
    %6 = vector.broadcast %cst : f32 to vector<2x128xf32>
    %7 = vector.broadcast %cst_6 : f32 to vector<2x128xf32>
    %8 = arith.select %5, %6, %7 : vector<2x128xi1>, vector<2x128xf32>
    %9 = arith.addf %3, %8 : vector<2x128xf32>
    %cst_7 = arith.constant 0.000000e+00 : f32
    %10 = vector.broadcast %cst_7 : f32 to vector<2x128xf32>
    %11 = arith.select %5, %3, %10 : vector<2x128xi1>, vector<2x128xf32>
    %c0_8 = arith.constant 0 : index
    %c1 = arith.constant 1 : index
    %c0_9 = arith.constant 0 : index
    %c0_10 = arith.constant 0 : index
    %12 = vector.load %arg2[%c0_8, %c1, %c0_9, %c0_10] : memref<1x4x2x128xf32, #tpu.memory_space<vmem>>, vector<1x1x2x128xf32>
    %13 = vector.shape_cast %12 : vector<1x1x2x128xf32> to vector<2x128xf32>
    %c1_i32 = arith.constant 1 : i32
    %14 = vector.broadcast %c1_i32 : i32 to vector<2x128xi32>
    %15 = arith.cmpi eq, %1, %14 : vector<2x128xi32>
    %cst_11 = arith.constant 0.000000e+00 : f32
    %cst_12 = arith.constant 1.000000e+00 : f32
    %16 = vector.broadcast %cst_11 : f32 to vector<2x128xf32>
    %17 = vector.broadcast %cst_12 : f32 to vector<2x128xf32>
    %18 = arith.select %15, %16, %17 : vector<2x128xi1>, vector<2x128xf32>
    %19 = arith.addf %13, %18 : vector<2x128xf32>
    %20 = arith.maximumf %9, %19 : vector<2x128xf32>
    %cst_13 = arith.constant 0.000000e+00 : f32
    %21 = vector.broadcast %cst_13 : f32 to vector<2x128xf32>
    %22 = arith.select %15, %13, %21 : vector<2x128xi1>, vector<2x128xf32>
    %23 = arith.addf %11, %22 : vector<2x128xf32>
    %c0_14 = arith.constant 0 : index
    %c2 = arith.constant 2 : index
    %c0_15 = arith.constant 0 : index
    %c0_16 = arith.constant 0 : index
    %24 = vector.load %arg2[%c0_14, %c2, %c0_15, %c0_16] : memref<1x4x2x128xf32, #tpu.memory_space<vmem>>, vector<1x1x2x128xf32>
    %25 = vector.shape_cast %24 : vector<1x1x2x128xf32> to vector<2x128xf32>
    %c2_i32 = arith.constant 2 : i32
    %26 = vector.broadcast %c2_i32 : i32 to vector<2x128xi32>
    %27 = arith.cmpi eq, %1, %26 : vector<2x128xi32>
    %cst_17 = arith.constant 0.000000e+00 : f32
    %cst_18 = arith.constant 1.000000e+00 : f32
    %28 = vector.broadcast %cst_17 : f32 to vector<2x128xf32>
    %29 = vector.broadcast %cst_18 : f32 to vector<2x128xf32>
    %30 = arith.select %27, %28, %29 : vector<2x128xi1>, vector<2x128xf32>
    %31 = arith.addf %25, %30 : vector<2x128xf32>
    %32 = arith.maximumf %20, %31 : vector<2x128xf32>
    %cst_19 = arith.constant 0.000000e+00 : f32
    %33 = vector.broadcast %cst_19 : f32 to vector<2x128xf32>
    %34 = arith.select %27, %25, %33 : vector<2x128xi1>, vector<2x128xf32>
    %35 = arith.addf %23, %34 : vector<2x128xf32>
    %c0_20 = arith.constant 0 : index
    %c3 = arith.constant 3 : index
    %c0_21 = arith.constant 0 : index
    %c0_22 = arith.constant 0 : index
    %36 = vector.load %arg2[%c0_20, %c3, %c0_21, %c0_22] : memref<1x4x2x128xf32, #tpu.memory_space<vmem>>, vector<1x1x2x128xf32>
    %37 = vector.shape_cast %36 : vector<1x1x2x128xf32> to vector<2x128xf32>
    %c3_i32 = arith.constant 3 : i32
    %38 = vector.broadcast %c3_i32 : i32 to vector<2x128xi32>
    %39 = arith.cmpi eq, %1, %38 : vector<2x128xi32>
    %cst_23 = arith.constant 0.000000e+00 : f32
    %cst_24 = arith.constant 1.000000e+00 : f32
    %40 = vector.broadcast %cst_23 : f32 to vector<2x128xf32>
    %41 = vector.broadcast %cst_24 : f32 to vector<2x128xf32>
    %42 = arith.select %39, %40, %41 : vector<2x128xi1>, vector<2x128xf32>
    %43 = arith.addf %37, %42 : vector<2x128xf32>
    %44 = arith.maximumf %32, %43 : vector<2x128xf32>
    %cst_25 = arith.constant 0.000000e+00 : f32
    %45 = vector.broadcast %cst_25 : f32 to vector<2x128xf32>
    %46 = arith.select %39, %37, %45 : vector<2x128xi1>, vector<2x128xf32>
    %47 = arith.addf %35, %46 : vector<2x128xf32>
    %48 = arith.subf %44, %47 : vector<2x128xf32>
    %49 = vector.shape_cast %48 : vector<2x128xf32> to vector<1x2x128xf32>
    %cst_26 = arith.constant dense<0.000000e+00> : vector<1xf32>
    %50 = vector.multi_reduction <add>, %49, %cst_26 [1, 2] : vector<1x2x128xf32> to vector<1xf32>
    %51 = vector.shape_cast %50 : vector<1xf32> to vector<1x1x1xf32>
    %52 = vector.extract %51[0, 0, 0] : f32 from vector<1x1x1xf32>
    %53 = tpu.iota {dimensions = array<i32: 0>} : vector<8x128xi32>
    %54 = tpu.iota {dimensions = array<i32: 1>} : vector<8x128xi32>
    %c0_i32_27 = arith.constant 0 : i32
    %55 = vector.broadcast %c0_i32_27 : i32 to vector<8x128xi32>
    %56 = arith.cmpi eq, %53, %55 : vector<8x128xi32>
    %c0_i32_28 = arith.constant 0 : i32
    %57 = vector.broadcast %c0_i32_28 : i32 to vector<8x128xi32>
    %58 = arith.cmpi eq, %54, %57 : vector<8x128xi32>
    %59 = arith.andi %56, %58 : vector<8x128xi1>
    %cst_29 = arith.constant 0.000000e+00 : f32
    %60 = vector.broadcast %52 : f32 to vector<8x128xf32>
    %61 = vector.broadcast %cst_29 : f32 to vector<8x128xf32>
    %62 = arith.select %59, %60, %61 : vector<8x128xi1>, vector<8x128xf32>
    %c0_30 = arith.constant 0 : index
    %c0_31 = arith.constant 0 : index
    %c0_32 = arith.constant 0 : index
    %c0_33 = arith.constant 0 : index
    %63 = vector.load %arg4[%c0_30, %c0_31, %c0_32, %c0_33] : memref<1x1x8x128xf32, #tpu.memory_space<vmem>>, vector<1x1x8x128xf32>
    %64 = vector.shape_cast %63 : vector<1x1x8x128xf32> to vector<8x128xf32>
    %65 = vector.shape_cast %62 : vector<8x128xf32> to vector<1x1x8x128xf32>
    tpu.vector_store %arg4[%c0_30, %c0_31, %c0_32, %c0_33], %65 {strides = array<i32>} : memref<1x1x8x128xf32, #tpu.memory_space<vmem>>, vector<1x1x8x128xf32>,
    return
  }
  func.func @transform_0(%arg0: i32, %arg1: i32) -> (i32, i32, i32, i32) {
    %c0_i32 = arith.constant 0 : i32
    %c0_i32_0 = arith.constant 0 : i32
    %c0_i32_1 = arith.constant 0 : i32
    return %arg0, %c0_i32, %arg1, %c0_i32_0 : i32, i32, i32, i32
  }
  func.func @transform_1(%arg0: i32, %arg1: i32) -> (i32, i32, i32) {
    %c0_i32 = arith.constant 0 : i32
    %c0_i32_0 = arith.constant 0 : i32
    return %arg0, %arg1, %c0_i32 : i32, i32, i32
  }
  func.func @transform_2(%arg0: i32, %arg1: i32) -> (i32, i32, i32, i32) {
    %c0_i32 = arith.constant 0 : i32
    %c0_i32_0 = arith.constant 0 : i32
    %c0_i32_1 = arith.constant 0 : i32
    return %arg0, %arg1, %c0_i32, %c0_i32_0 : i32, i32, i32, i32
  }
}

</mosaic_0001>

<llo_original>
// kernel: tpu_custom_call.1
$region0: #{tpu_custom_call.1}
  #allocation0 [shape = 'u32[]', space=smem, size = 0x4, offset = 0x4, fixed_abs, tag = 'smem constant byte address 0x4 - core index']
  #allocation1 [shape = 'u32[144,128]{1,0:T(1,128)}', space=vmem, size = 0x12000, scoped, tag = 'internal scratch']
  %s0 = inlined_call_operand.hbm [shape: f32[2,4,2,128], index: 0, kind: input, shape index: {}]
  %s1 = inlined_call_operand.hbm [shape: s32[2,2,128], index: 1, kind: input, shape index: {}]
  %s2 = inlined_call_operand.hbm [shape: f32[2,1,8,128], index: 2, kind: output, shape index: {}]
  %s3 = sld [smem:[#allocation0]]
  $region49: #{tpu_custom_call.1} parent=0
    _
  %s5 = ssub.s32 1, %s3
  %s6 = scalar_select 0, %s5, %s3
  $region1: #{tpu_custom_call.1} parent=0
    #allocation2 [shape = 'u8[8192]{0}', space=vmem, size = 0x2000, scoped, tag = 'input window, operand 0']
    #allocation3 [shape = 's32[2]{0}', space=sflag, size = 0x8, scoped, tag = 'scoped memory for tpu_custom_call.1']
    #allocation4 [shape = 's32[2]{0}', space=sflag, size = 0x8, scoped, tag = 'scoped memory for tpu_custom_call.1']
    #allocation5 [shape = 'u8[2048]{0}', space=vmem, size = 0x800, scoped, tag = 'input window, operand 1']
    #allocation6 [shape = 's32[2]{0}', space=sflag, size = 0x8, scoped, tag = 'scoped memory for tpu_custom_call.1']
    #allocation7 [shape = 'u8[8192]{0}', space=vmem, size = 0x2000, scoped, tag = 'output window, operand 0']
    %7 = vsyncpa [#allocation3], 0
    %s8 = scalar_lea.sflag [#allocation3], 1
    %9 = vsyncpa %s8, 0
    %10 = vsyncpa [#allocation6], 0
    %s11 = scalar_lea.sflag [#allocation6], 1
    %12 = vsyncpa %s11, 0
    %13 = vsyncpa [#allocation4], 0
    %s14 = scalar_lea.sflag [#allocation4], 1
    %15 = vsyncpa %s14, 0
    loop: start=0, step=1, limit=4
    $region2: #{tpu_custom_call.1} parent=1 // loop_pre_header
      _
    $region3: #{tpu_custom_call.1} parent=1 // loop_header
      %s17 = sphi 0, %s21
      %p18 = scmp.ge.s32.totalorder %s17, 4
      %s24 = sphi 0, %s36
      %s25 = sphi 0, %s32
      %s26 = sphi 0, %s24
      %s27 = sphi 0, %s25
      %s28 = sphi 0, %s26
      %s29 = sphi 0, %s27
      %s41 = sphi 0, %s43
      %s44 = sphi 0, %s41
      %s45 = sphi 0, %s44
      %s61 = sphi 0, %s45
      %s69 = sphi 0, %s71
      %s72 = sphi 0, %s69
      %s73 = sphi 0, %s72
      %s89 = sphi 0, %s73
      %s97 = sphi 0, %s99
      %s100 = sphi 0, %s97
      %s101 = sphi 0, %s100
      %s117 = sphi 0, %s101
    $region4: #{tpu_custom_call.1} parent=1 // loop_header_branch
      %20 = sbr.rel (%p18) target = $region8
    $region5: #{tpu_custom_call.1} parent=1 // loop_body
      %s22 = ssub.s32 %s17, 1
      %s23 = ssub.s32 %s17, 2
      %s30 = sadd.s32 1, %s25
      %p31 = scmp.ge.s32.totalorder %s30, 1
      %s32 = scalar_select %p31, 0, %s30
      %s33 = sadd.s32 1, %s24
      %s34 = scalar_select %p31, %s33, %s24
      %p35 = scmp.ge.s32.totalorder %s34, 2
      %s36 = scalar_select %p35, 0, %s34
      %s37 = ssub.s32 %s24, %s36
      %s38 = ssub.s32 %s25, %s32
      %s39 = sor.u32 %s37, %s38
      %p40 = scmp.eq.s32.totalorder %s39, 0
      %s42 = sadd.s32 %s41, 1
      %s43 = scalar_select %p40, %s41, %s42
      %p46 = pneg %p40
      %p47 = scmp.eq.s32.totalorder %s17, 1
      %p48 = por %p46, %p47
      %p49 = scmp.ne.s32.totalorder %s41, %s44
      %p50 = scmp.eq.s32.totalorder %s17, 0
      %p51 = por %p49, %p50
      %p52 = scmp.ne.s32.totalorder %s41, %s44
      %p53 = scmp.eq.s32.totalorder %s22, 1
      %p54 = por %p52, %p53
      %p55 = scmp.ne.s32.totalorder %s44, %s45
      %p56 = scmp.eq.s32.totalorder %s22, 0
      %p57 = por %p55, %p56
      %p58 = scmp.ne.s32.totalorder %s44, %s45
      %p59 = scmp.eq.s32.totalorder %s23, 1
      %p60 = por %p58, %p59
      %p62 = scmp.ne.s32.totalorder %s45, %s61
      %p63 = scmp.eq.s32.totalorder %s23, 0
      %p64 = por %p62, %p63
      %s65 = ssub.s32 %s24, %s36
      %s66 = ssub.s32 %s25, %s32
      %s67 = sor.u32 %s65, %s66
      %p68 = scmp.eq.s32.totalorder %s67, 0
      %s70 = sadd.s32 %s69, 1
      %s71 = scalar_select %p68, %s69, %s70
      %p74 = pneg %p68
      %p75 = scmp.eq.s32.totalorder %s17, 1
      %p76 = por %p74, %p75
      %p77 = scmp.ne.s32.totalorder %s69, %s72
      %p78 = scmp.eq.s32.totalorder %s17, 0
      %p79 = por %p77, %p78
      %p80 = scmp.ne.s32.totalorder %s69, %s72
      %p81 = scmp.eq.s32.totalorder %s22, 1
      %p82 = por %p80, %p81
      %p83 = scmp.ne.s32.totalorder %s72, %s73
      %p84 = scmp.eq.s32.totalorder %s22, 0
      %p85 = por %p83, %p84
      %p86 = scmp.ne.s32.totalorder %s72, %s73
      %p87 = scmp.eq.s32.totalorder %s23, 1
      %p88 = por %p86, %p87
      %p90 = scmp.ne.s32.totalorder %s73, %s89
      %p91 = scmp.eq.s32.totalorder %s23, 0
      %p92 = por %p90, %p91
      %s93 = ssub.s32 %s24, %s36
      %s94 = ssub.s32 %s25, %s32
      %s95 = sor.u32 %s93, %s94
      %p96 = scmp.eq.s32.totalorder %s95, 0
      %s98 = sadd.s32 %s97, 1
      %s99 = scalar_select %p96, %s97, %s98
      %p102 = pneg %p96
      %p103 = scmp.eq.s32.totalorder %s17, 1
      %p104 = por %p102, %p103
      %p105 = scmp.ne.s32.totalorder %s97, %s100
      %p106 = scmp.eq.s32.totalorder %s17, 0
      %p107 = por %p105, %p106
      %p108 = scmp.ne.s32.totalorder %s97, %s100
      %p109 = scmp.eq.s32.totalorder %s22, 1
      %p110 = por %p108, %p109
      %p111 = scmp.ne.s32.totalorder %s100, %s101
      %p112 = scmp.eq.s32.totalorder %s22, 0
      %p113 = por %p111, %p112
      %p114 = scmp.ne.s32.totalorder %s100, %s101
      %p115 = scmp.eq.s32.totalorder %s23, 1
      %p116 = por %p114, %p115
      %p118 = scmp.ne.s32.totalorder %s101, %s117
      %p119 = scmp.eq.s32.totalorder %s23, 0
      %p120 = por %p118, %p119
      %p121 = scmp.le.s32.totalorder 1, %s17
      %p122 = scmp.lt.s32.totalorder %s17, 3
      %p123 = pnand %p121, %p122
      %p124 = pneg %p123
      // Predicated region
      $region9: #{tpu_custom_call.1} parent=5 // pred_check
        _
      $region10: #{tpu_custom_call.1} parent=5 // pred_check_branch
        %126 = sbr.rel (%p123) target = $region12
      $region11: #{tpu_custom_call.1} parent=5 // pred_region
        %s127 = ssub.s32 %s17, 1
      $region12: #{tpu_custom_call.1} parent=5 // pred_fallthru
        _
      %p128 = scmp.lt.s32.totalorder %s17, 2
      // Predicated region
      $region13: #{tpu_custom_call.1} parent=5 // pred_check
        %p129 = pneg %p128
      $region14: #{tpu_custom_call.1} parent=5 // pred_check_branch
        %131 = sbr.rel (%p129) target = $region16
      $region15: #{tpu_custom_call.1} parent=5 // pred_region
        // Predicated region
        $region17: #{tpu_custom_call.1} parent=15 // pred_check
          %p132 = pneg %p51
        $region18: #{tpu_custom_call.1} parent=15 // pred_check_branch
          %134 = sbr.rel (%p132) target = $region20
        $region19: #{tpu_custom_call.1} parent=15 // pred_region
          %s135 = sand.u32 %s41, 1
          %s136 = scalar_lea.sflag [#allocation3], %s135
          %s137 = sand.u32 %s41, 1
          %s138 = smul.addr %s137, 8
          %s139 = scalar_lea.vmem [#allocation2], %s138
          %s141 = ssub.s32 128, 128
          %142 = vsyncadd %s136, %s141
          %s143 = smul.addr %s24, 4
          %s144 = sadd.s32 %s25, %s143
          %s145 = smul.addr %s144, 32
          %s146 = scalar_lea.hbm %s0, %s145
          %s147 = sshll.u32 %s139, 4
          %s148 = int_to_ptr.vmem [resolvable:$true] %s147
          %153 = dma.hbm_to_vmem [thread:$0]  %s146, 128, %s148, %s136, 32, 32, 2
        $region20: #{tpu_custom_call.1} parent=15 // pred_fallthru
          _
        // Predicated region
        $region21: #{tpu_custom_call.1} parent=15 // pred_check
          %p154 = pneg %p79
        $region22: #{tpu_custom_call.1} parent=15 // pred_check_branch
          %156 = sbr.rel (%p154) target = $region24
        $region23: #{tpu_custom_call.1} parent=15 // pred_region
          %s157 = sand.u32 %s69, 1
          %s158 = scalar_lea.sflag [#allocation6], %s157
          %s159 = sand.u32 %s69, 1
          %s160 = smul.addr %s159, 2
          %s161 = scalar_lea.vmem [#allocation5], %s160
          %s163 = ssub.s32 32, 32
          %164 = vsyncadd %s158, %s163
          %s165 = sadd.s32 %s25, %s24
          %s166 = smul.addr %s165, 32
          %s167 = scalar_lea.hbm %s1, %s166
          %s169 = sshll.u32 %s161, 4
          %s170 = int_to_ptr.vmem [resolvable:$true] %s169
          %172 = dma.hbm_to_vmem [thread:$0]  %s167, 32, %s170, %s158
        $region24: #{tpu_custom_call.1} parent=15 // pred_fallthru
          _
      $region16: #{tpu_custom_call.1} parent=5 // pred_fallthru
        _
      %p173 = scmp.le.s32.totalorder 1, %s17
      %p174 = scmp.lt.s32.totalorder %s17, 3
      %p175 = pnand %p173, %p174
      %p176 = pneg %p175
      // Predicated region
      $region25: #{tpu_custom_call.1} parent=5 // pred_check
        _
      $region26: #{tpu_custom_call.1} parent=5 // pred_check_branch
        %178 = sbr.rel (%p175) target = $region28
      $region27: #{tpu_custom_call.1} parent=5 // pred_region
        %s179 = ssub.s32 %s17, 1
        %s180 = sand.u32 %s44, 1
        %s181 = scalar_lea.sflag [#allocation3], %s180
        %s182 = sand.u32 %s44, 1
        %s183 = smul.addr %s182, 8
        %s184 = scalar_lea.vmem [#allocation2], %s183
        // Predicated region
        $region29: #{tpu_custom_call.1} parent=27 // pred_check
          %p185 = pneg %p57
        $region30: #{tpu_custom_call.1} parent=27 // pred_check_branch
          %187 = sbr.rel (%p185) target = $region32
        $region31: #{tpu_custom_call.1} parent=27 // pred_region
          %188 = dma.done %s181, 128
        $region32: #{tpu_custom_call.1} parent=27 // pred_fallthru
          _
        %s189 = sand.u32 %s72, 1
        %s190 = scalar_lea.sflag [#allocation6], %s189
        %s191 = sand.u32 %s72, 1
        %s192 = smul.addr %s191, 2
        %s193 = scalar_lea.vmem [#allocation5], %s192
        // Predicated region
        $region33: #{tpu_custom_call.1} parent=27 // pred_check
          %p194 = pneg %p85
        $region34: #{tpu_custom_call.1} parent=27 // pred_check_branch
          %196 = sbr.rel (%p194) target = $region36
        $region35: #{tpu_custom_call.1} parent=27 // pred_region
          %197 = dma.done %s190, 32
        $region36: #{tpu_custom_call.1} parent=27 // pred_fallthru
          _
        %s198 = sand.u32 %s44, 1
        %s199 = scalar_lea.sflag [#allocation3], %s198
        %s200 = sand.u32 %s44, 1
        %s201 = smul.addr %s200, 8
        %s202 = scalar_lea.vmem [#allocation2], %s201
        %p203 = pneg %p57
        %p204 = pneg %p54
        %s205 = sand.u32 %s72, 1
        %s206 = scalar_lea.sflag [#allocation6], %s205
        %s207 = sand.u32 %s72, 1
        %s208 = smul.addr %s207, 2
        %s209 = scalar_lea.vmem [#allocation5], %s208
        %p210 = pneg %p85
        %p211 = pneg %p82
        %p212 = pneg %p113
        %p213 = pneg %p110
        %s214 = sand.u32 %s100, 1
        %s215 = scalar_lea.sflag [#allocation4], %s214
        %s216 = sand.u32 %s100, 1
        %s217 = smul.addr %s216, 8
        %s218 = scalar_lea.vmem [#allocation7], %s217
        %v219 = vld [vmem:[%s193] sm:$0x3]
        %v220 = vld [vmem:[%s184] sm:$0x3]
        %vm221 = vcmp.eq.s32.totalorder %v219, 0
        %v222 = vsel %vm221, 0.0, 1.0
        %v223 = vadd.f32 %v220, %v222
        %v224 = vsel %vm221, %v220, 0.0
        %s225 = scalar_lea.vmem %s184, 2 [#allocation2]
        %v226 = vld [vmem:[%s225] sm:$0x3]
        %vm227 = vcmp.eq.s32.totalorder %v219, 1
        %v228 = vsel %vm227, 0.0, 1.0
        %v229 = vadd.f32 %v226, %v228
        %v230 = vmax.f32 %v223, %v229
        %v231 = vsel %vm227, %v226, 0.0
        %v232 = vadd.f32 %v224, %v231
        %s233 = scalar_lea.vmem %s184, 4 [#allocation2]
        %v234 = vld [vmem:[%s233] sm:$0x3]
        %vm235 = vcmp.eq.s32.totalorder %v219, 2
        %v236 = vsel %vm235, 0.0, 1.0
        %v237 = vadd.f32 %v234, %v236
        %v238 = vmax.f32 %v230, %v237
        %v239 = vsel %vm235, %v234, 0.0
        %v240 = vadd.f32 %v232, %v239
        %s241 = scalar_lea.vmem %s184, 6 [#allocation2]
        %v242 = vld [vmem:[%s241] sm:$0x3]
        %vm243 = vcmp.eq.s32.totalorder %v219, 3
        %v244 = vsel %vm243, 0.0, 1.0
        %v245 = vadd.f32 %v242, %v244
        %v246 = vmax.f32 %v238, %v245
        %v247 = vsel %vm243, %v242, 0.0
        %v248 = vadd.f32 %v240, %v247
        %v249 = vsub.f32 %v246, %v248
        %vm250 = vcmask 1041408
        %v251 = vsel %vm250, %v249, 0.0
        %252 = vadd.xlane.f32.xlu0 %v251
        %v253 = vpop.xlane.xlu0 %252
        %v254 = vrot.slane %v253, 4
        %v255 = vadd.f32 %v253, %v254
        %v256 = vrot.slane %v255, 2
        %v257 = vadd.f32 %v255, %v256
        %v258 = vrot.slane %v257, 1
        %v259 = vadd.f32 %v257, %v258
        %s260 = vtos %v259
        %v261 = vlaneseq
        %v262 = vshrl.u32 %v261, 7
        %v263 = vlaneseq
        %v264 = vand.u32 %v263, 127
        %vm265 = vcmp.eq.s32.totalorder %v262, 0
        %vm266 = vcmp.eq.s32.totalorder %v264, 0
        %vm267 = vmand %vm265, %vm266
        %v268 = vstv %s260
        %v269 = vsel %vm267, %v268, 0.0
        %270 = vst [vmem:[%s218] sm:$0xff] %v269
        %s271 = sand.u32 %s100, 1
        %s272 = scalar_lea.sflag [#allocation4], %s271
        %s273 = sand.u32 %s100, 1
        %s274 = smul.addr %s273, 8
        %s275 = scalar_lea.vmem [#allocation7], %s274
        // Predicated region
        $region37: #{tpu_custom_call.1} parent=27 // pred_check
          %p276 = pneg %p110
        $region38: #{tpu_custom_call.1} parent=27 // pred_check_branch
          %278 = sbr.rel (%p276) target = $region40
        $region39: #{tpu_custom_call.1} parent=27 // pred_region
          %s280 = ssub.s32 128, 128
          %281 = vsyncadd %s272, %s280
          %s282 = sadd.s32 %s27, %s26
          %s283 = smul.addr %s282, 128
          %s284 = scalar_lea.hbm %s2, %s283
          %s286 = sshll.u32 %s275, 4
          %s287 = int_to_ptr.vmem [resolvable:$true] %s286
          %289 = dma.vmem_to_hbm [thread:$0]  %s287, 128, %s284, %s272
        $region40: #{tpu_custom_call.1} parent=27 // pred_fallthru
          _
      $region28: #{tpu_custom_call.1} parent=5 // pred_fallthru
        _
      %p290 = scmp.le.s32.totalorder 2, %s17
      // Predicated region
      $region41: #{tpu_custom_call.1} parent=5 // pred_check
        %p291 = pneg %p290
      $region42: #{tpu_custom_call.1} parent=5 // pred_check_branch
        %293 = sbr.rel (%p291) target = $region44
      $region43: #{tpu_custom_call.1} parent=5 // pred_region
        %s294 = ssub.s32 %s17, 2
        // Predicated region
        $region45: #{tpu_custom_call.1} parent=43 // pred_check
          %p295 = pneg %p116
        $region46: #{tpu_custom_call.1} parent=43 // pred_check_branch
          %297 = sbr.rel (%p295) target = $region48
        $region47: #{tpu_custom_call.1} parent=43 // pred_region
          %s298 = sand.u32 %s101, 1
          %s299 = scalar_lea.sflag [#allocation4], %s298
          %s300 = sand.u32 %s101, 1
          %s301 = smul.addr %s300, 8
          %s302 = scalar_lea.vmem [#allocation7], %s301
          %303 = dma.done %s299, 128
        $region48: #{tpu_custom_call.1} parent=43 // pred_fallthru
          _
      $region44: #{tpu_custom_call.1} parent=5 // pred_fallthru
        _
    $region6: #{tpu_custom_call.1} parent=1 // loop_footer
      %s21 = sadd.s32 1, %s17
    $region7: #{tpu_custom_call.1} parent=1 // loop_footer_branch
      %16 = sbr.rel target = $region3
    $region8: #{tpu_custom_call.1} parent=1 // loop_exit
      _
    %304 = vsyncpa [#allocation3], 1
    %s305 = scalar_lea.sflag [#allocation3], 1
    %306 = vsyncpa %s305, 1
    %307 = vsyncpa [#allocation6], 1
    %s308 = scalar_lea.sflag [#allocation6], 1
    %309 = vsyncpa %s308, 1
    %310 = vsyncpa [#allocation4], 1
    %s311 = scalar_lea.sflag [#allocation4], 1
    %312 = vsyncpa %s311, 1

</llo_original>
